<compile_context>
chip_gen: v6e
topology: v6e:2x2x1
jax: 0.10.0
libtpu: 0.0.40
codegen_flags: <defaults>
</compile_context>

<pallas_src>
import functools

import jax
import jax.numpy as jnp
import numpy as np
from jax.experimental import pallas as pl
from jax.experimental.pallas import tpu as pltpu

BN_EPS = 1e-5


# ----------------------------- Pallas kernel ------------------------------- #

def _fused_basic_block_kernel(xrows_ref, resid_ref, wb1_ref, wb2_ref,
                              g1_ref, b1_ref, g2_ref, b2_ref, comb_ref,
                              out_ref, h1_ref, *, B, H, L, inv_n):
    """Fused BasicBlock forward (training-mode batch statistics).

    xrows_ref : (B, H+2, L) bf16  input rows, (w,c)-packed lanes, zero halo rows
    resid_ref : (B*H, L)    f32   identity residual (same lane packing)
    wb*_ref   : (3*L, L)    bf16  block-banded 3x3 weights (kh stacked along K)
    g*/b*_ref : (1, L)      f32   BN affine params, tiled per (w, c) lane
    comb_ref  : (L, L)      f32   comb[i,j] = 1 iff i%C == j%C (w-reduction)
    out_ref   : (B*H, L)    f32   output rows
    h1_ref    : (B, H+2, L) bf16  scratch: bn1/relu rows with zero halo rows
    """
    N = B * H

    def conv3x3(src_ref, wb_ref):
        # K-packed conv: concat the 3 kh-shifted row slabs along K and run ONE
        # bf16 MXU matmul (N, 3L) x (3L, L) with f32 accumulation.  kw taps and
        # the left/right border clipping are baked into the banded weight.
        slabs = [src_ref[:, kh:kh + H, :].reshape(N, L) for kh in range(3)]
        return jnp.dot(jnp.concatenate(slabs, axis=-1), wb_ref[...],
                       preferred_element_type=jnp.float32)

    def batch_norm(c, g_t, b_t):
        # Per-channel batch stats.  Lanes are (w, c)-packed, so the reduction
        # over w (and the broadcast back across w) is one small comb matmul;
        # rows are reduced with a plain sublane sum.  Centered two-pass
        # variance avoids the E[x^2]-E[x]^2 cancellation.
        s = jnp.sum(jnp.dot(c, comb_ref[...],
                            preferred_element_type=jnp.float32),
                    axis=0, keepdims=True)
        mean = s * inv_n
        centered = c - mean
        v = jnp.sum(jnp.dot(centered * centered, comb_ref[...],
                            preferred_element_type=jnp.float32),
                    axis=0, keepdims=True)
        scale = g_t * jax.lax.rsqrt(v * inv_n + BN_EPS)
        bias = b_t - mean * scale
        return c * scale + bias                       # single FMA per element

    # ---- conv1 -> bn1 -> relu ----
    c1 = conv3x3(xrows_ref, wb1_ref)
    h1 = jnp.maximum(batch_norm(c1, g1_ref[...], b1_ref[...]), 0.0)

    # Stage h1 (bf16) for conv2: zero ONLY the two halo rows per batch; the
    # interior is written exactly once.
    h1_ref[:, 0:1, :] = jnp.zeros((B, 1, L), h1_ref.dtype)
    h1_ref[:, H + 1:H + 2, :] = jnp.zeros((B, 1, L), h1_ref.dtype)
    h1_ref[:, 1:H + 1, :] = h1.astype(h1_ref.dtype).reshape(B, H, L)

    # ---- conv2 -> bn2 -> +residual -> relu ----
    c2 = conv3x3(h1_ref, wb2_ref)
    y = batch_norm(c2, g2_ref[...], b2_ref[...]) + resid_ref[...]
    out_ref[...] = jnp.maximum(y, 0.0)


# ------------------------------ JAX wrapper --------------------------------- #

def basic_block_forward(x_nchw, params):
    """BasicBlock forward (stride=1, downsample=None, se=False)."""
    w1, g1, b1, w2, g2, b2 = params                # w: (3, 3, Cin, Cout) HWIO
    B, C, H, W = x_nchw.shape
    planes = w1.shape[3]
    assert w1.shape[2] == C and planes == C, "identity residual needs inplanes == planes"
    L = W * C                                       # (w, c)-packed lane width

    # --- pack activations: NCHW -> (B, H, W*C) rows + zero halo rows (bf16 MXU)
    x_nhwc = jnp.transpose(x_nchw, (0, 2, 3, 1)).astype(jnp.float32)
    x_rows = x_nhwc.reshape(B, H, L)
    xrows_pad = jnp.pad(x_rows, ((0, 0), (1, 1), (0, 0))).astype(jnp.bfloat16)
    resid = x_rows.reshape(B * H, L)                # f32 residual, exact

    # --- block-banded weights: (3L, L); kw taps + border clip baked in
    P = np.zeros((3, 3, W, W), np.float32)          # (kh, kw, w_in, w_out)
    for kw in range(3):
        for wo in range(W):
            wi = wo + kw - 1
            if 0 <= wi < W:
                P[:, kw, wi, wo] = 1.0
    P = jnp.asarray(P)

    def banded(w):                                  # (3,3,Cin,Cout) -> (3L, L) bf16
        b = jnp.einsum('kqio,kqcd->kicod', P, w.astype(jnp.float32))
        return b.reshape(3 * L, L).astype(jnp.bfloat16)

    def tiled_affine(v):                            # (C,) -> (1, L), lane w*C + c
        return jnp.tile(v.astype(jnp.float32).reshape(1, C), (1, W))

    comb = jnp.asarray(
        (np.arange(L)[:, None] % C == np.arange(L)[None, :] % C).astype(np.float32))

    kernel = functools.partial(_fused_basic_block_kernel,
                               B=B, H=H, L=L, inv_n=1.0 / (B * H * W))
    vmem = pl.BlockSpec(memory_space=pltpu.MemorySpace.VMEM)

    out2d = pl.pallas_call(
        kernel,
        out_shape=jax.ShapeDtypeStruct((B * H, L), jnp.float32),
        in_specs=[vmem] * 9,
        out_specs=vmem,
        scratch_shapes=[pltpu.VMEM((B, H + 2, L), jnp.bfloat16)],   # h1 rows + halo
    )(xrows_pad, resid, banded(w1), banded(w2),
      tiled_affine(g1), tiled_affine(b1), tiled_affine(g2), tiled_affine(b2),
      comb)

    out = out2d.reshape(B, H, W, C)
    return jnp.transpose(out, (0, 3, 1, 2))         # back to NCHW


# --------------------------- pure-JAX reference ------------------------------ #

def _ref_forward(x_nchw, params):
    w1, g1, b1, w2, g2, b2 = params

    def conv(x, w):
        return jax.lax.conv_general_dilated(
            x, w, window_strides=(1, 1), padding="SAME",
            dimension_numbers=("NCHW", "HWIO", "NCHW"))

    def bn(x, g, b):
        mean = x.mean(axis=(0, 2, 3), keepdims=True)
        var = x.var(axis=(0, 2, 3), keepdims=True)  # biased, like BN forward
        return (x - mean) / jnp.sqrt(var + BN_EPS) * g.reshape(1, -1, 1, 1) \
               + b.reshape(1, -1, 1, 1)

    out = jnp.maximum(bn(conv(x_nchw, w1), g1, b1), 0.0)
    out = bn(conv(out, w2), g2, b2) + x_nchw
    return jnp.maximum(out, 0.0)


# --------------------------------- main -------------------------------------- #

if __name__ == "__main__":
    B, C, H, W = 2, 8, 16, 16          # inplanes == planes == 8; W*C = 128 lanes
    planes = C

    key = jax.random.PRNGKey(0)
    k_x, k_w1, k_w2, k_g1, k_b1, k_g2, k_b2 = jax.random.split(key, 7)

    x = jax.random.normal(k_x, (B, C, H, W), jnp.float32)
    # conv weights stored HWIO = (3, 3, Cin, Cout); BN affine params per channel.
    w1 = jax.random.normal(k_w1, (3, 3, C, planes), jnp.float32) * 0.1
    w2 = jax.random.normal(k_w2, (3, 3, planes, planes), jnp.float32) * 0.1
    g1 = 1.0 + 0.1 * jax.random.normal(k_g1, (planes,), jnp.float32)
    b1 = 0.1 * jax.random.normal(k_b1, (planes,), jnp.float32)
    g2 = 1.0 + 0.1 * jax.random.normal(k_g2, (planes,), jnp.float32)
    b2 = 0.1 * jax.random.normal(k_b2, (planes,), jnp.float32)
    params = (w1, g1, b1, w2, g2, b2)

    out = jax.block_until_ready(jax.jit(basic_block_forward)(x, params))
    ref = _ref_forward(x, params)

    assert out.shape == (B, planes, H, W)
    # bf16 MXU operands + bf16 h1 staging vs. the pure-f32 reference: expected
    # abs error ~1e-2 after two bf16 convs; tolerance sized with margin.
    np.testing.assert_allclose(np.asarray(out), np.asarray(ref),
                               rtol=3e-2, atol=5e-2)

    print("KERNEL_OK")
</pallas_src>

<mosaic_0001>
module attributes {stable_mosaic.version = 11 : i64} {
  func.func @_fused_basic_block_kernel(%arg0: memref<2x18x128xbf16, #tpu.memory_space<vmem>>, %arg1: memref<32x128xf32, #tpu.memory_space<vmem>>, %arg2: memref<384x128xbf16, #tpu.memory_space<vmem>>, %arg3: memref<384x128xbf16, #tpu.memory_space<vmem>>, %arg4: memref<1x128xf32, #tpu.memory_space<vmem>>, %arg5: memref<1x128xf32, #tpu.memory_space<vmem>>, %arg6: memref<1x128xf32, #tpu.memory_space<vmem>>, %arg7: memref<1x128xf32, #tpu.memory_space<vmem>>, %arg8: memref<128x128xf32, #tpu.memory_space<vmem>>, %arg9: memref<32x128xf32, #tpu.memory_space<vmem>>, %arg10: memref<2x18x128xbf16, #tpu.memory_space<vmem>>) attributes {dimension_semantics = [], scalar_prefetch = 0 : i64, scratch_operands = 1 : i64, tpu.core_type = #tpu.core_type<tc>} {
    %c0 = arith.constant 0 : index
    %c0_0 = arith.constant 0 : index
    %c0_1 = arith.constant 0 : index
    %0 = vector.load %arg0[%c0, %c0_0, %c0_1] : memref<2x18x128xbf16, #tpu.memory_space<vmem>>, vector<2x16x128xbf16>
    %1 = vector.shape_cast %0 : vector<2x16x128xbf16> to vector<32x128xbf16>
    %c0_2 = arith.constant 0 : index
    %c1 = arith.constant 1 : index
    %c0_3 = arith.constant 0 : index
    %2 = vector.load %arg0[%c0_2, %c1, %c0_3] : memref<2x18x128xbf16, #tpu.memory_space<vmem>>, vector<2x16x128xbf16>
    %3 = vector.shape_cast %2 : vector<2x16x128xbf16> to vector<32x128xbf16>
    %c0_4 = arith.constant 0 : index
    %c2 = arith.constant 2 : index
    %c0_5 = arith.constant 0 : index
    %4 = vector.load %arg0[%c0_4, %c2, %c0_5] : memref<2x18x128xbf16, #tpu.memory_space<vmem>>, vector<2x16x128xbf16>
    %5 = vector.shape_cast %4 : vector<2x16x128xbf16> to vector<32x128xbf16>
    %6 = tpu.concatenate %1, %3, %5 in 1 : vector<32x128xbf16>, vector<32x128xbf16>, vector<32x128xbf16> -> vector<32x384xbf16>
    %c0_6 = arith.constant 0 : index
    %c0_7 = arith.constant 0 : index
    %7 = vector.load %arg2[%c0_6, %c0_7] : memref<384x128xbf16, #tpu.memory_space<vmem>>, vector<384x128xbf16>
    %cst = arith.constant dense<0.000000e+00> : vector<32x128xf32>
    %8 = tpu.matmul %6, %7, %cst {dimension_numbers = #tpu.dot_dimension_numbers<[1], [0], [0], [1], [0, 0, 1, 1], [], []>} : vector<32x384xbf16>, vector<384x128xbf16>, vector<32x128xf32> -> vector<32x128xf32>
    %c0_8 = arith.constant 0 : index
    %c0_9 = arith.constant 0 : index
    %9 = vector.load %arg4[%c0_8, %c0_9] : memref<1x128xf32, #tpu.memory_space<vmem>>, vector<1x128xf32>
    %c0_10 = arith.constant 0 : index
    %c0_11 = arith.constant 0 : index
    %10 = vector.load %arg5[%c0_10, %c0_11] : memref<1x128xf32, #tpu.memory_space<vmem>>, vector<1x128xf32>
    %c0_12 = arith.constant 0 : index
    %c0_13 = arith.constant 0 : index
    %11 = vector.load %arg8[%c0_12, %c0_13] : memref<128x128xf32, #tpu.memory_space<vmem>>, vector<128x128xf32>
    %cst_14 = arith.constant dense<0.000000e+00> : vector<32x128xf32>
    %12 = tpu.matmul %8, %11, %cst_14 {dimension_numbers = #tpu.dot_dimension_numbers<[1], [0], [0], [1], [0, 0, 1, 1], [], []>} : vector<32x128xf32>, vector<128x128xf32>, vector<32x128xf32> -> vector<32x128xf32>
    %cst_15 = arith.constant dense<0.000000e+00> : vector<128xf32>
    %13 = vector.multi_reduction <add>, %12, %cst_15 [0] : vector<32x128xf32> to vector<128xf32>
    %14 = vector.shape_cast %13 : vector<128xf32> to vector<1x128xf32>
    %cst_16 = arith.constant 0.001953125 : f32
    %15 = vector.broadcast %cst_16 : f32 to vector<1x128xf32>
    %16 = arith.mulf %14, %15 : vector<1x128xf32>
    %17 = vector.broadcast %16 : vector<1x128xf32> to vector<32x128xf32>
    %18 = arith.subf %8, %17 : vector<32x128xf32>
    %19 = arith.mulf %18, %18 : vector<32x128xf32>
    %c0_17 = arith.constant 0 : index
    %c0_18 = arith.constant 0 : index
    %20 = vector.load %arg8[%c0_17, %c0_18] : memref<128x128xf32, #tpu.memory_space<vmem>>, vector<128x128xf32>
    %cst_19 = arith.constant dense<0.000000e+00> : vector<32x128xf32>
    %21 = tpu.matmul %19, %20, %cst_19 {dimension_numbers = #tpu.dot_dimension_numbers<[1], [0], [0], [1], [0, 0, 1, 1], [], []>} : vector<32x128xf32>, vector<128x128xf32>, vector<32x128xf32> -> vector<32x128xf32>
    %cst_20 = arith.constant dense<0.000000e+00> : vector<128xf32>
    %22 = vector.multi_reduction <add>, %21, %cst_20 [0] : vector<32x128xf32> to vector<128xf32>
    %23 = vector.shape_cast %22 : vector<128xf32> to vector<1x128xf32>
    %cst_21 = arith.constant 0.001953125 : f32
    %24 = vector.broadcast %cst_21 : f32 to vector<1x128xf32>
    %25 = arith.mulf %23, %24 : vector<1x128xf32>
    %cst_22 = arith.constant 9.99999974E-6 : f32
    %26 = vector.broadcast %cst_22 : f32 to vector<1x128xf32>
    %27 = arith.addf %25, %26 : vector<1x128xf32>
    %28 = math.rsqrt %27 : vector<1x128xf32>
    %29 = arith.mulf %9, %28 : vector<1x128xf32>
    %30 = arith.mulf %16, %29 : vector<1x128xf32>
    %31 = arith.subf %10, %30 : vector<1x128xf32>
    %32 = vector.broadcast %29 : vector<1x128xf32> to vector<32x128xf32>
    %33 = arith.mulf %8, %32 : vector<32x128xf32>
    %34 = vector.broadcast %31 : vector<1x128xf32> to vector<32x128xf32>
    %35 = arith.addf %33, %34 : vector<32x128xf32>
    %cst_23 = arith.constant 0.000000e+00 : f32
    %36 = vector.broadcast %cst_23 : f32 to vector<32x128xf32>
    %37 = arith.maximumf %35, %36 : vector<32x128xf32>
    %cst_24 = arith.constant 0.000000e+00 : bf16
    %38 = vector.broadcast %cst_24 : bf16 to vector<2x1x128xbf16>
    %c0_25 = arith.constant 0 : index
    %c0_26 = arith.constant 0 : index
    %c0_27 = arith.constant 0 : index
    %39 = vector.load %arg10[%c0_25, %c0_26, %c0_27] : memref<2x18x128xbf16, #tpu.memory_space<vmem>>, vector<2x1x128xbf16>
    tpu.vector_store %arg10[%c0_25, %c0_26, %c0_27], %38 {strides = array<i32>} : memref<2x18x128xbf16, #tpu.memory_space<vmem>>, vector<2x1x128xbf16>,
    %cst_28 = arith.constant 0.000000e+00 : bf16
    %40 = vector.broadcast %cst_28 : bf16 to vector<2x1x128xbf16>
    %c0_29 = arith.constant 0 : index
    %c17 = arith.constant 17 : index
    %c0_30 = arith.constant 0 : index
    %41 = vector.load %arg10[%c0_29, %c17, %c0_30] : memref<2x18x128xbf16, #tpu.memory_space<vmem>>, vector<2x1x128xbf16>
    tpu.vector_store %arg10[%c0_29, %c17, %c0_30], %40 {strides = array<i32>} : memref<2x18x128xbf16, #tpu.memory_space<vmem>>, vector<2x1x128xbf16>,
    %42 = arith.truncf %37 : vector<32x128xf32> to vector<32x128xbf16>
    %43 = vector.shape_cast %42 : vector<32x128xbf16> to vector<2x16x128xbf16>
    %c0_31 = arith.constant 0 : index
    %c1_32 = arith.constant 1 : index
    %c0_33 = arith.constant 0 : index
    %44 = vector.load %arg10[%c0_31, %c1_32, %c0_33] : memref<2x18x128xbf16, #tpu.memory_space<vmem>>, vector<2x16x128xbf16>
    tpu.vector_store %arg10[%c0_31, %c1_32, %c0_33], %43 {strides = array<i32>} : memref<2x18x128xbf16, #tpu.memory_space<vmem>>, vector<2x16x128xbf16>,
    %c0_34 = arith.constant 0 : index
    %c0_35 = arith.constant 0 : index
    %c0_36 = arith.constant 0 : index
    %45 = vector.load %arg10[%c0_34, %c0_35, %c0_36] : memref<2x18x128xbf16, #tpu.memory_space<vmem>>, vector<2x16x128xbf16>
    %46 = vector.shape_cast %45 : vector<2x16x128xbf16> to vector<32x128xbf16>
    %c0_37 = arith.constant 0 : index
    %c1_38 = arith.constant 1 : index
    %c0_39 = arith.constant 0 : index
    %47 = vector.load %arg10[%c0_37, %c1_38, %c0_39] : memref<2x18x128xbf16, #tpu.memory_space<vmem>>, vector<2x16x128xbf16>
    %48 = vector.shape_cast %47 : vector<2x16x128xbf16> to vector<32x128xbf16>
    %c0_40 = arith.constant 0 : index
    %c2_41 = arith.constant 2 : index
    %c0_42 = arith.constant 0 : index
    %49 = vector.load %arg10[%c0_40, %c2_41, %c0_42] : memref<2x18x128xbf16, #tpu.memory_space<vmem>>, vector<2x16x128xbf16>
    %50 = vector.shape_cast %49 : vector<2x16x128xbf16> to vector<32x128xbf16>
    %51 = tpu.concatenate %46, %48, %50 in 1 : vector<32x128xbf16>, vector<32x128xbf16>, vector<32x128xbf16> -> vector<32x384xbf16>
    %c0_43 = arith.constant 0 : index
    %c0_44 = arith.constant 0 : index
    %52 = vector.load %arg3[%c0_43, %c0_44] : memref<384x128xbf16, #tpu.memory_space<vmem>>, vector<384x128xbf16>
    %cst_45 = arith.constant dense<0.000000e+00> : vector<32x128xf32>
    %53 = tpu.matmul %51, %52, %cst_45 {dimension_numbers = #tpu.dot_dimension_numbers<[1], [0], [0], [1], [0, 0, 1, 1], [], []>} : vector<32x384xbf16>, vector<384x128xbf16>, vector<32x128xf32> -> vector<32x128xf32>
    %c0_46 = arith.constant 0 : index
    %c0_47 = arith.constant 0 : index
    %54 = vector.load %arg6[%c0_46, %c0_47] : memref<1x128xf32, #tpu.memory_space<vmem>>, vector<1x128xf32>
    %c0_48 = arith.constant 0 : index
    %c0_49 = arith.constant 0 : index
    %55 = vector.load %arg7[%c0_48, %c0_49] : memref<1x128xf32, #tpu.memory_space<vmem>>, vector<1x128xf32>
    %c0_50 = arith.constant 0 : index
    %c0_51 = arith.constant 0 : index
    %56 = vector.load %arg8[%c0_50, %c0_51] : memref<128x128xf32, #tpu.memory_space<vmem>>, vector<128x128xf32>
    %cst_52 = arith.constant dense<0.000000e+00> : vector<32x128xf32>
    %57 = tpu.matmul %53, %56, %cst_52 {dimension_numbers = #tpu.dot_dimension_numbers<[1], [0], [0], [1], [0, 0, 1, 1], [], []>} : vector<32x128xf32>, vector<128x128xf32>, vector<32x128xf32> -> vector<32x128xf32>
    %cst_53 = arith.constant dense<0.000000e+00> : vector<128xf32>
    %58 = vector.multi_reduction <add>, %57, %cst_53 [0] : vector<32x128xf32> to vector<128xf32>
    %59 = vector.shape_cast %58 : vector<128xf32> to vector<1x128xf32>
    %cst_54 = arith.constant 0.001953125 : f32
    %60 = vector.broadcast %cst_54 : f32 to vector<1x128xf32>
    %61 = arith.mulf %59, %60 : vector<1x128xf32>
    %62 = vector.broadcast %61 : vector<1x128xf32> to vector<32x128xf32>
    %63 = arith.subf %53, %62 : vector<32x128xf32>
    %64 = arith.mulf %63, %63 : vector<32x128xf32>
    %c0_55 = arith.constant 0 : index
    %c0_56 = arith.constant 0 : index
    %65 = vector.load %arg8[%c0_55, %c0_56] : memref<128x128xf32, #tpu.memory_space<vmem>>, vector<128x128xf32>
    %cst_57 = arith.constant dense<0.000000e+00> : vector<32x128xf32>
    %66 = tpu.matmul %64, %65, %cst_57 {dimension_numbers = #tpu.dot_dimension_numbers<[1], [0], [0], [1], [0, 0, 1, 1], [], []>} : vector<32x128xf32>, vector<128x128xf32>, vector<32x128xf32> -> vector<32x128xf32>
    %cst_58 = arith.constant dense<0.000000e+00> : vector<128xf32>
    %67 = vector.multi_reduction <add>, %66, %cst_58 [0] : vector<32x128xf32> to vector<128xf32>
    %68 = vector.shape_cast %67 : vector<128xf32> to vector<1x128xf32>
    %cst_59 = arith.constant 0.001953125 : f32
    %69 = vector.broadcast %cst_59 : f32 to vector<1x128xf32>
    %70 = arith.mulf %68, %69 : vector<1x128xf32>
    %cst_60 = arith.constant 9.99999974E-6 : f32
    %71 = vector.broadcast %cst_60 : f32 to vector<1x128xf32>
    %72 = arith.addf %70, %71 : vector<1x128xf32>
    %73 = math.rsqrt %72 : vector<1x128xf32>
    %74 = arith.mulf %54, %73 : vector<1x128xf32>
    %75 = arith.mulf %61, %74 : vector<1x128xf32>
    %76 = arith.subf %55, %75 : vector<1x128xf32>
    %77 = vector.broadcast %74 : vector<1x128xf32> to vector<32x128xf32>
    %78 = arith.mulf %53, %77 : vector<32x128xf32>
    %79 = vector.broadcast %76 : vector<1x128xf32> to vector<32x128xf32>
    %80 = arith.addf %78, %79 : vector<32x128xf32>
    %c0_61 = arith.constant 0 : index
    %c0_62 = arith.constant 0 : index
    %81 = vector.load %arg1[%c0_61, %c0_62] : memref<32x128xf32, #tpu.memory_space<vmem>>, vector<32x128xf32>
    %82 = arith.addf %80, %81 : vector<32x128xf32>
    %cst_63 = arith.constant 0.000000e+00 : f32
    %83 = vector.broadcast %cst_63 : f32 to vector<32x128xf32>
    %84 = arith.maximumf %82, %83 : vector<32x128xf32>
    %c0_64 = arith.constant 0 : index
    %c0_65 = arith.constant 0 : index
    %85 = vector.load %arg9[%c0_64, %c0_65] : memref<32x128xf32, #tpu.memory_space<vmem>>, vector<32x128xf32>
    tpu.vector_store %arg9[%c0_64, %c0_65], %84 {strides = array<i32>} : memref<32x128xf32, #tpu.memory_space<vmem>>, vector<32x128xf32>,
    return
  }
}

</mosaic_0001>

<llo_original>
// kernel: basic_block_forward.1
$region0: #{basic_block_forward.1}
  #allocation0 [shape = 'u32[]', space=smem, size = 0x4, offset = 0x4, fixed_abs, tag = 'smem constant byte address 0x4 - core index']
  #allocation1 [shape = 'u32[144,128]{1,0:T(1,128)}', space=vmem, size = 0x12000, scoped, tag = 'internal scratch']
  #allocation2 [shape = 'bf16[2,18,128]{2,1,0:T(8,128)(2,1)}', space=vmem, size = 0x3000, scoped, tag = 'scratch operand']
  %s0 = inlined_call_operand.vmem [shape: bf16[2,18,128], index: 0, kind: input, shape index: {}]
  %s1 = inlined_call_operand.vmem [shape: f32[32,128], index: 1, kind: input, shape index: {}]
  %s2 = inlined_call_operand.vmem [shape: bf16[384,128], index: 2, kind: input, shape index: {}]
  %s3 = inlined_call_operand.vmem [shape: bf16[384,128], index: 3, kind: input, shape index: {}]
  %s4 = inlined_call_operand.vmem [shape: f32[1,128], index: 4, kind: input, shape index: {}]
  %s5 = inlined_call_operand.vmem [shape: f32[1,128], index: 5, kind: input, shape index: {}]
  %s6 = inlined_call_operand.vmem [shape: f32[1,128], index: 6, kind: input, shape index: {}]
  %s7 = inlined_call_operand.vmem [shape: f32[1,128], index: 7, kind: input, shape index: {}]
  %s8 = inlined_call_operand.vmem [shape: f32[128,128], index: 8, kind: input, shape index: {}]
  %s9 = inlined_call_operand.vmem [shape: f32[32,128], index: 9, kind: output, shape index: {}]
  %s10 = sld [smem:[#allocation0]]
  $region46: #{basic_block_forward.1} parent=0
    _
  %s12 = ssub.s32 1, %s10
  %s13 = scalar_select 0, %s12, %s10
  // Predicated region
  $region2: #{basic_block_forward.1} parent=0 // pred_check
    _
  $region3: #{basic_block_forward.1} parent=0 // pred_check_branch
    %15 = sbr.rel (0) target = $region5
  $region4: #{basic_block_forward.1} parent=0 // pred_region
    _
  $region5: #{basic_block_forward.1} parent=0 // pred_fallthru
    _
  // Predicated region
  $region6: #{basic_block_forward.1} parent=0 // pred_check
    _
  $region7: #{basic_block_forward.1} parent=0 // pred_check_branch
    %17 = sbr.rel (0) target = $region9
  $region8: #{basic_block_forward.1} parent=0 // pred_region
    _
  $region9: #{basic_block_forward.1} parent=0 // pred_fallthru
    _
  // Predicated region
  $region10: #{basic_block_forward.1} parent=0 // pred_check
    _
  $region11: #{basic_block_forward.1} parent=0 // pred_check_branch
    %19 = sbr.rel (0) target = $region13
  $region12: #{basic_block_forward.1} parent=0 // pred_region
    _
  $region13: #{basic_block_forward.1} parent=0 // pred_fallthru
    _
  // Predicated region
  $region14: #{basic_block_forward.1} parent=0 // pred_check
    _
  $region15: #{basic_block_forward.1} parent=0 // pred_check_branch
    %21 = sbr.rel (0) target = $region17
  $region16: #{basic_block_forward.1} parent=0 // pred_region
    _
  $region17: #{basic_block_forward.1} parent=0 // pred_fallthru
    _
  // Predicated region
  $region18: #{basic_block_forward.1} parent=0 // pred_check
    _
  $region19: #{basic_block_forward.1} parent=0 // pred_check_branch
    %23 = sbr.rel (0) target = $region21
  $region20: #{basic_block_forward.1} parent=0 // pred_region
    _
  $region21: #{basic_block_forward.1} parent=0 // pred_fallthru
    _
  // Predicated region
  $region22: #{basic_block_forward.1} parent=0 // pred_check
    _
  $region23: #{basic_block_forward.1} parent=0 // pred_check_branch
    %25 = sbr.rel (0) target = $region25
  $region24: #{basic_block_forward.1} parent=0 // pred_region
    _
  $region25: #{basic_block_forward.1} parent=0 // pred_fallthru
    _
  // Predicated region
  $region26: #{basic_block_forward.1} parent=0 // pred_check
    _
  $region27: #{basic_block_forward.1} parent=0 // pred_check_branch
    %27 = sbr.rel (0) target = $region29
  $region28: #{basic_block_forward.1} parent=0 // pred_region
    _
  $region29: #{basic_block_forward.1} parent=0 // pred_fallthru
    _
  // Predicated region
  $region30: #{basic_block_forward.1} parent=0 // pred_check
    _
  $region31: #{basic_block_forward.1} parent=0 // pred_check_branch
    %29 = sbr.rel (0) target = $region33
  $region32: #{basic_block_forward.1} parent=0 // pred_region
    _
  $region33: #{basic_block_forward.1} parent=0 // pred_fallthru
    _
  // Predicated region
  $region34: #{basic_block_forward.1} parent=0 // pred_check
    _
  $region35: #{basic_block_forward.1} parent=0 // pred_check_branch
    %31 = sbr.rel (0) target = $region37
  $region36: #{basic_block_forward.1} parent=0 // pred_region
    _
  $region37: #{basic_block_forward.1} parent=0 // pred_fallthru
    _
  %v33 = vld [vmem:[%s0] sm:$0xf]
  %v34 = vld [vmem:[%s0 + $0x4] sm:$0xf]
  %v35 = vld [vmem:[%s0 + $0xc] sm:$0xf]
  %v36 = vld [vmem:[%s0 + $0x10] sm:$0xf]
  %v37 = vld [vmem:[%s0 + $0x8] sm:$0x1]
  %v38 = vld [vmem:[%s0 + $0x14] sm:$0x1]
  %vm39 = vsmask.f32 3328
  %vm40 = vsmask.f32 7440
  %vm41 = vmor %vm39, %vm40
  %v43 = vshrl.u32 %v33, 16
  %v45 = vrot.slane %v43, 4
  %v46 = vshll.u32 %v33, 16
  %v48 = vrot.slane %v46, 5
  %v49 = vor.u32 %v45, %v48
  %v50 = vrot.slane %v49, 4
  %v52 = vshll.u32 %v34, 16
  %v54 = vrot.slane %v52, 5
  %v55 = vsel %vm41, %v50, %v54
  %v56 = vshrl.u32 %v34, 16
  %v58 = vrot.slane %v56, 4
  %v59 = vor.u32 %v58, %v54
  %v60 = vrot.slane %v59, 4
  %v62 = vshll.u32 %v37, 16
  %v64 = vrot.slane %v62, 5
  %v65 = vsel %vm41, %v60, %v64
  %v67 = vshrl.u32 %v35, 16
  %v69 = vrot.slane %v67, 4
  %v70 = vshll.u32 %v35, 16
  %v72 = vrot.slane %v70, 5
  %v73 = vor.u32 %v69, %v72
  %v74 = vrot.slane %v73, 4
  %v76 = vshll.u32 %v36, 16
  %v78 = vrot.slane %v76, 5
  %v79 = vsel %vm41, %v74, %v78
  %v80 = vshrl.u32 %v36, 16
  %v82 = vrot.slane %v80, 4
  %v83 = vor.u32 %v82, %v78
  %v84 = vrot.slane %v83, 4
  %v86 = vshll.u32 %v38, 16
  %v88 = vrot.slane %v86, 5
  %v89 = vsel %vm41, %v84, %v88
  %v90 = vld [vmem:[%s0] sm:$0xe]
  %v91 = vld [vmem:[%s0 + $0xc] sm:$0xe]
  %vm98 = vcmask 1042432
  %vm99 = vcmask 1046532
  %vm100 = vmor %vm98, %vm99
  %v101 = vrot.slane %v90, 5
  %v102 = vrot.slane %v101, 4
  %v103 = vrot.slane %v34, 5
  %v104 = vsel %vm100, %v102, %v103
  %v105 = vrot.slane %v103, 4
  %v106 = vrot.slane %v37, 5
  %v107 = vsel %vm100, %v105, %v106
  %v108 = vrot.slane %v91, 5
  %v109 = vrot.slane %v108, 4
  %v110 = vrot.slane %v36, 5
  %v111 = vsel %vm100, %v109, %v110
  %v112 = vrot.slane %v110, 4
  %v113 = vrot.slane %v38, 5
  %v114 = vsel %vm100, %v112, %v113
  %v117 = vunpack.c.l.b16 %v33
  %v118 = vunpack.c.l.b16 %v34
  %v119 = vunpack.c.l.b16 %v35
  %v120 = vunpack.c.l.b16 %v36
  %v121 = vpack.c.b16 %v118, %v117
  %v122 = vpack.c.b16 %v120, %v119
  %v125 = vunpack.c.l.b16 %v55
  %v126 = vunpack.c.l.b16 %v65
  %v127 = vunpack.c.l.b16 %v79
  %v128 = vunpack.c.l.b16 %v89
  %v129 = vpack.c.b16 %v126, %v125
  %v130 = vpack.c.b16 %v128, %v127
  %v133 = vunpack.c.l.b16 %v104
  %v134 = vunpack.c.l.b16 %v107
  %v135 = vunpack.c.l.b16 %v111
  %v136 = vunpack.c.l.b16 %v114
  %v137 = vpack.c.b16 %v134, %v133
  %v138 = vpack.c.b16 %v136, %v135
  %v141 = vld [vmem:[%s2] sm:$0xf]
  %v142 = vld [vmem:[%s2 + $0x4] sm:$0xf]
  %v143 = vld [vmem:[%s2 + $0x8] sm:$0xf]
  %v144 = vld [vmem:[%s2 + $0xc] sm:$0xf]
  %v145 = vld [vmem:[%s2 + $0x10] sm:$0xf]
  %v146 = vld [vmem:[%s2 + $0x14] sm:$0xf]
  %v147 = vld [vmem:[%s2 + $0x18] sm:$0xf]
  %v148 = vld [vmem:[%s2 + $0x1c] sm:$0xf]
  %v149 = vld [vmem:[%s2 + $0x20] sm:$0xf]
  %v150 = vld [vmem:[%s2 + $0x24] sm:$0xf]
  %v151 = vld [vmem:[%s2 + $0x28] sm:$0xf]
  %v152 = vld [vmem:[%s2 + $0x2c] sm:$0xf]
  %v153 = vld [vmem:[%s2 + $0x30] sm:$0xf]
  %v154 = vld [vmem:[%s2 + $0x34] sm:$0xf]
  %v155 = vld [vmem:[%s2 + $0x38] sm:$0xf]
  %v156 = vld [vmem:[%s2 + $0x3c] sm:$0xf]
  %v157 = vld [vmem:[%s2 + $0x40] sm:$0xf]
  %v158 = vld [vmem:[%s2 + $0x44] sm:$0xf]
  %v159 = vld [vmem:[%s2 + $0x48] sm:$0xf]
  %v160 = vld [vmem:[%s2 + $0x4c] sm:$0xf]
  %v161 = vld [vmem:[%s2 + $0x50] sm:$0xf]
  %v162 = vld [vmem:[%s2 + $0x54] sm:$0xf]
  %v163 = vld [vmem:[%s2 + $0x58] sm:$0xf]
  %v164 = vld [vmem:[%s2 + $0x5c] sm:$0xf]
  %v165 = vld [vmem:[%s2 + $0x60] sm:$0xf]
  %v166 = vld [vmem:[%s2 + $0x64] sm:$0xf]
  %v167 = vld [vmem:[%s2 + $0x68] sm:$0xf]
  %v168 = vld [vmem:[%s2 + $0x6c] sm:$0xf]
  %v169 = vld [vmem:[%s2 + $0x70] sm:$0xf]
  %v170 = vld [vmem:[%s2 + $0x74] sm:$0xf]
  %v171 = vld [vmem:[%s2 + $0x78] sm:$0xf]
  %v172 = vld [vmem:[%s2 + $0x7c] sm:$0xf]
  %v173 = vld [vmem:[%s2 + $0x80] sm:$0xf]
  %v174 = vld [vmem:[%s2 + $0x84] sm:$0xf]
  %v175 = vld [vmem:[%s2 + $0x88] sm:$0xf]
  %v176 = vld [vmem:[%s2 + $0x8c] sm:$0xf]
  %v177 = vld [vmem:[%s2 + $0x90] sm:$0xf]
  %v178 = vld [vmem:[%s2 + $0x94] sm:$0xf]
  %v179 = vld [vmem:[%s2 + $0x98] sm:$0xf]
  %v180 = vld [vmem:[%s2 + $0x9c] sm:$0xf]
  %v181 = vld [vmem:[%s2 + $0xa0] sm:$0xf]
  %v182 = vld [vmem:[%s2 + $0xa4] sm:$0xf]
  %v183 = vld [vmem:[%s2 + $0xa8] sm:$0xf]
  %v184 = vld [vmem:[%s2 + $0xac] sm:$0xf]
  %v185 = vld [vmem:[%s2 + $0xb0] sm:$0xf]
  %v186 = vld [vmem:[%s2 + $0xb4] sm:$0xf]
  %v187 = vld [vmem:[%s2 + $0xb8] sm:$0xf]
  %v188 = vld [vmem:[%s2 + $0xbc] sm:$0xf]
  %v237 = vunpack.c.l.b16 %v141
  %v238 = vunpack.c.l.b16 %v142
  %v239 = vunpack.c.l.b16 %v143
  %v240 = vunpack.c.l.b16 %v144
  %v241 = vunpack.c.l.b16 %v145
  %v242 = vunpack.c.l.b16 %v146
  %v243 = vunpack.c.l.b16 %v147
  %v244 = vunpack.c.l.b16 %v148
  %v245 = vunpack.c.l.b16 %v149
  %v246 = vunpack.c.l.b16 %v150
  %v247 = vunpack.c.l.b16 %v151
  %v248 = vunpack.c.l.b16 %v152
  %v249 = vunpack.c.l.b16 %v153
  %v250 = vunpack.c.l.b16 %v154
  %v251 = vunpack.c.l.b16 %v155
  %v252 = vunpack.c.l.b16 %v156
  %v253 = vunpack.c.l.b16 %v157
  %v254 = vunpack.c.l.b16 %v158
  %v255 = vunpack.c.l.b16 %v159
  %v256 = vunpack.c.l.b16 %v160
  %v257 = vunpack.c.l.b16 %v161
  %v258 = vunpack.c.l.b16 %v162
  %v259 = vunpack.c.l.b16 %v163
  %v260 = vunpack.c.l.b16 %v164
  %v261 = vunpack.c.l.b16 %v165
  %v262 = vunpack.c.l.b16 %v166
  %v263 = vunpack.c.l.b16 %v167
  %v264 = vunpack.c.l.b16 %v168
  %v265 = vunpack.c.l.b16 %v169
  %v266 = vunpack.c.l.b16 %v170
  %v267 = vunpack.c.l.b16 %v171
  %v268 = vunpack.c.l.b16 %v172
  %v269 = vunpack.c.l.b16 %v173
  %v270 = vunpack.c.l.b16 %v174
  %v271 = vunpack.c.l.b16 %v175
  %v272 = vunpack.c.l.b16 %v176
  %v273 = vunpack.c.l.b16 %v177
  %v274 = vunpack.c.l.b16 %v178
  %v275 = vunpack.c.l.b16 %v179
  %v276 = vunpack.c.l.b16 %v180
  %v277 = vunpack.c.l.b16 %v181
  %v278 = vunpack.c.l.b16 %v182
  %v279 = vunpack.c.l.b16 %v183
  %v280 = vunpack.c.l.b16 %v184
  %v281 = vunpack.c.l.b16 %v185
  %v282 = vunpack.c.l.b16 %v186
  %v283 = vunpack.c.l.b16 %v187
  %v284 = vunpack.c.l.b16 %v188
  %v285 = vpack.c.b16 %v238, %v237
  %v286 = vpack.c.b16 %v240, %v239
  %v287 = vpack.c.b16 %v242, %v241
  %v288 = vpack.c.b16 %v244, %v243
  %v289 = vpack.c.b16 %v246, %v245
  %v290 = vpack.c.b16 %v248, %v247
  %v291 = vpack.c.b16 %v250, %v249
  %v292 = vpack.c.b16 %v252, %v251
  %v293 = vpack.c.b16 %v254, %v253
  %v294 = vpack.c.b16 %v256, %v255
  %v295 = vpack.c.b16 %v258, %v257
  %v296 = vpack.c.b16 %v260, %v259
  %v297 = vpack.c.b16 %v262, %v261
  %v298 = vpack.c.b16 %v264, %v263
  %v299 = vpack.c.b16 %v266, %v265
  %v300 = vpack.c.b16 %v268, %v267
  %v301 = vpack.c.b16 %v270, %v269
  %v302 = vpack.c.b16 %v272, %v271
  %v303 = vpack.c.b16 %v274, %v273
  %v304 = vpack.c.b16 %v276, %v275
  %v305 = vpack.c.b16 %v278, %v277
  %v306 = vpack.c.b16 %v280, %v279
  %v307 = vpack.c.b16 %v282, %v281
  %v308 = vpack.c.b16 %v284, %v283
  %333 = vmatprep.subr.bf16.mxu0 0
  %334 = vmatpush1.bf16.msra.mxu0 %v292
  %335 = vmatprep.subr.bf16.mxu0 0
  %336 = vmatpush1.bf16.msra.mxu0 %v291
  %337 = vmatprep.subr.bf16.mxu0 0
  %338 = vmatpush1.bf16.msra.mxu0 %v290
  %339 = vmatprep.subr.bf16.mxu0 0
  %340 = vmatpush1.bf16.msra.mxu0 %v289
  %341 = vmatprep.subr.bf16.mxu0 0
  %342 = vmatpush1.bf16.msra.mxu0 %v288
  %343 = vmatprep.subr.bf16.mxu0 0
  %344 = vmatpush1.bf16.msra.mxu0 %v287
  %345 = vmatprep.subr.bf16.mxu0 0
  %346 = vmatpush1.bf16.msra.mxu0 %v286
  %347 = vmatprep.subr.bf16.mxu0 0
  %348 = vmatpush1.bf16.msra.mxu0 %v285
  %349 = vmatprep.subr.bf16.mxu0 0
  %350 = vmatpush2.bf16.msra.mxu0 %v300
  %351 = vmatprep.subr.bf16.mxu0 0
  %352 = vmatpush2.bf16.msra.mxu0 %v299
  %353 = vmatprep.subr.bf16.mxu0 0
  %354 = vmatpush2.bf16.msra.mxu0 %v298
  %355 = vmatprep.subr.bf16.mxu0 0
  %356 = vmatpush2.bf16.msra.mxu0 %v297
  %357 = vmatprep.subr.bf16.mxu0 0
  %358 = vmatpush2.bf16.msra.mxu0 %v296
  %359 = vmatprep.subr.bf16.mxu0 0
  %360 = vmatpush2.bf16.msra.mxu0 %v295
  %361 = vmatprep.subr.bf16.mxu0 0
  %362 = vmatpush2.bf16.msra.mxu0 %v294
  %363 = vmatprep.subr.bf16.mxu0 0
  %364 = vmatpush2.bf16.msra.mxu0 %v293
  %365 = vmatprep.mubr.bf16.mxu0 %v129
  %366 = vmatmul.mubr.bf16.gmra.mxu0 %v121
  %v367 = vpop.f32.mrf.mxu0
  %v368 = vadd.f32 0.0, %v367
  %v369 = vpop.f32.mrf.mxu0
  %v370 = vpop.f32.mrf.mxu0
  %v371 = vadd.f32 0.0, %v370
  %v372 = vpop.f32.mrf.mxu0
  %373 = vmatprep.mubr.bf16.mxu0 %v130
  %374 = vmatmul.mubr.bf16.gmra.mxu0 %v122
  %v375 = vpop.f32.mrf.mxu0
  %v376 = vadd.f32 0.0, %v375
  %v377 = vpop.f32.mrf.mxu0
  %v378 = vpop.f32.mrf.mxu0
  %v379 = vadd.f32 0.0, %v378
  %v380 = vpop.f32.mrf.mxu0
  %381 = vdwg.mxu0
  %382 = vmatprep.subr.bf16.mxu0 0
  %383 = vmatpush1.bf16.msra.mxu0 %v308
  %384 = vmatprep.subr.bf16.mxu0 0
  %385 = vmatpush1.bf16.msra.mxu0 %v307
  %386 = vmatprep.subr.bf16.mxu0 0
  %387 = vmatpush1.bf16.msra.mxu0 %v306
  %388 = vmatprep.subr.bf16.mxu0 0
  %389 = vmatpush1.bf16.msra.mxu0 %v305
  %390 = vmatprep.subr.bf16.mxu0 0
  %391 = vmatpush1.bf16.msra.mxu0 %v304
  %392 = vmatprep.subr.bf16.mxu0 0
  %393 = vmatpush1.bf16.msra.mxu0 %v303
  %394 = vmatprep.subr.bf16.mxu0 0
  %395 = vmatpush1.bf16.msra.mxu0 %v302
  %396 = vmatprep.subr.bf16.mxu0 0
  %397 = vmatpush1.bf16.msra.mxu0 %v301
  %398 = vmatprep.subr.bf16.mxu0 0
  %399 = vmatpush2.bf16.msra.mxu0 0
  %400 = vmatprep.subr.bf16.mxu0 0
  %401 = vmatpush2.bf16.msra.mxu0 0
  %402 = vmatprep.subr.bf16.mxu0 0
  %403 = vmatpush2.bf16.msra.mxu0 0
  %404 = vmatprep.subr.bf16.mxu0 0
  %405 = vmatpush2.bf16.msra.mxu0 0
  %406 = vmatprep.subr.bf16.mxu0 0
  %407 = vmatpush2.bf16.msra.mxu0 0
  %408 = vmatprep.subr.bf16.mxu0 0
  %409 = vmatpush2.bf16.msra.mxu0 0
  %410 = vmatprep.subr.bf16.mxu0 0
  %411 = vmatpush2.bf16.msra.mxu0 0
  %412 = vmatprep.subr.bf16.mxu0 0
  %413 = vmatpush2.bf16.msra.mxu0 0
  %414 = vmatprep.mubr.bf16.mxu0 0
  %415 = vmatmul.mubr.bf16.gmra.mxu0 %v137
  %v416 = vpop.f32.mrf.mxu0
  %v417 = vadd.f32 %v368, %v416
  %v418 = vpop.f32.mrf.mxu0
  %v419 = vpop.f32.mrf.mxu0
  %v420 = vadd.f32 %v371, %v419
  %v421 = vpop.f32.mrf.mxu0
  %422 = vmatprep.mubr.bf16.mxu0 0
  %423 = vmatmul.mubr.bf16.gmra.mxu0 %v138
  %v424 = vpop.f32.mrf.mxu0
  %v425 = vadd.f32 %v376, %v424
  %v426 = vpop.f32.mrf.mxu0
  %v427 = vpop.f32.mrf.mxu0
  %v428 = vadd.f32 %v379, %v427
  %v429 = vpop.f32.mrf.mxu0
  %430 = vdwg.mxu0
  %v431 = vld [vmem:[%s4] sm:$0x1]
  %v432 = vld [vmem:[%s5] sm:$0x1]
  %v433 = vld [vmem:[%s8] sm:$0xff]
  %v434 = vld [vmem:[%s8 + $0x8] sm:$0xff]
  %v435 = vld [vmem:[%s8 + $0x10] sm:$0xff]
  %v436 = vld [vmem:[%s8 + $0x18] sm:$0xff]
  %v437 = vld [vmem:[%s8 + $0x20] sm:$0xff]
  %v438 = vld [vmem:[%s8 + $0x28] sm:$0xff]
  %v439 = vld [vmem:[%s8 + $0x30] sm:$0xff]
  %v440 = vld [vmem:[%s8 + $0x38] sm:$0xff]
  %v441 = vld [vmem:[%s8 + $0x40] sm:$0xff]
  %v442 = vld [vmem:[%s8 + $0x48] sm:$0xff]
  %v443 = vld [vmem:[%s8 + $0x50] sm:$0xff]
  %v444 = vld [vmem:[%s8 + $0x58] sm:$0xff]
  %v445 = vld [vmem:[%s8 + $0x60] sm:$0xff]
  %v446 = vld [vmem:[%s8 + $0x68] sm:$0xff]
  %v447 = vld [vmem:[%s8 + $0x70] sm:$0xff]
  %v448 = vld [vmem:[%s8 + $0x78] sm:$0xff]
  %449 = vmatprep.subr.mxu0 0.0
  %450 = vmatpush1.msra.mxu0 %v448
  %451 = vmatprep.subr.mxu0 0.0
  %452 = vmatpush1.msra.mxu0 %v447
  %453 = vmatprep.subr.mxu0 0.0
  %454 = vmatpush1.msra.mxu0 %v446
  %455 = vmatprep.subr.mxu0 0.0
  %456 = vmatpush1.msra.mxu0 %v445
  %457 = vmatprep.subr.mxu0 0.0
  %458 = vmatpush1.msra.mxu0 %v444
  %459 = vmatprep.subr.mxu0 0.0
  %460 = vmatpush1.msra.mxu0 %v443
  %461 = vmatprep.subr.mxu0 0.0
  %462 = vmatpush1.msra.mxu0 %v442
  %463 = vmatprep.subr.mxu0 0.0
  %464 = vmatpush1.msra.mxu0 %v441
  %465 = vmatprep.subr.mxu0 0.0
  %466 = vmatpush1.msra.mxu0 %v440
  %467 = vmatprep.subr.mxu0 0.0
  %468 = vmatpush1.msra.mxu0 %v439
  %469 = vmatprep.subr.mxu0 0.0
  %470 = vmatpush1.msra.mxu0 %v438
  %471 = vmatprep.subr.mxu0 0.0
  %472 = vmatpush1.msra.mxu0 %v437
  %473 = vmatprep.subr.mxu0 0.0
  %474 = vmatpush1.msra.mxu0 %v436
  %475 = vmatprep.subr.mxu0 0.0
  %476 = vmatpush1.msra.mxu0 %v435
  %477 = vmatprep.subr.mxu0 0.0
  %478 = vmatpush1.msra.mxu0 %v434
  %479 = vmatprep.subr.mxu0 0.0
  %480 = vmatpush1.msra.mxu0 %v433
  %481 = vmatprep.subr.mxu0 0.0
  %482 = vmatpush2.msra.mxu0 0.0
  %483 = vmatprep.subr.mxu0 0.0
  %484 = vmatpush2.msra.mxu0 0.0
  %485 = vmatprep.subr.mxu0 0.0
  %486 = vmatpush2.msra.mxu0 0.0
  %487 = vmatprep.subr.mxu0 0.0
  %488 = vmatpush2.msra.mxu0 0.0
  %489 = vmatprep.subr.mxu0 0.0
  %490 = vmatpush2.msra.mxu0 0.0
  %491 = vmatprep.subr.mxu0 0.0
  %492 = vmatpush2.msra.mxu0 0.0
  %493 = vmatprep.subr.mxu0 0.0
  %494 = vmatpush2.msra.mxu0 0.0
  %495 = vmatprep.subr.mxu0 0.0
  %496 = vmatpush2.msra.mxu0 0.0
  %497 = vmatprep.subr.mxu0 0.0
  %498 = vmatpush2.msra.mxu0 0.0
  %499 = vmatprep.subr.mxu0 0.0
  %500 = vmatpush2.msra.mxu0 0.0
  %501 = vmatprep.subr.mxu0 0.0
  %502 = vmatpush2.msra.mxu0 0.0
  %503 = vmatprep.subr.mxu0 0.0
  %504 = vmatpush2.msra.mxu0 0.0
  %505 = vmatprep.subr.mxu0 0.0
  %506 = vmatpush2.msra.mxu0 0.0
  %507 = vmatprep.subr.mxu0 0.0
  %508 = vmatpush2.msra.mxu0 0.0
  %509 = vmatprep.subr.mxu0 0.0
  %510 = vmatpush2.msra.mxu0 0.0
  %511 = vmatprep.subr.mxu0 0.0
  %512 = vmatpush2.msra.mxu0 0.0
  %513 = vmatprep.mubr.f32.mxu0 0.0
  %514 = vmatmul.mubr.f32.gmra.mxu0 %v417
  %v515 = vpop.f32.mrf.mxu0
  %v516 = vadd.f32 0.0, %v515
  %v517 = vpop.f32.mrf.mxu0
  %518 = vmatprep.mubr.f32.mxu0 0.0
  %519 = vmatmul.mubr.f32.gmra.mxu0 %v420
  %v520 = vpop.f32.mrf.mxu0
  %v521 = vadd.f32 0.0, %v520
  %v522 = vpop.f32.mrf.mxu0
  %523 = vmatprep.mubr.f32.mxu0 0.0
  %524 = vmatmul.mubr.f32.gmra.mxu0 %v425
  %v525 = vpop.f32.mrf.mxu0
  %v526 = vadd.f32 0.0, %v525
  %v527 = vpop.f32.mrf.mxu0
  %528 = vmatprep.mubr.f32.mxu0 0.0
  %529 = vmatmul.mubr.f32.gmra.mxu0 %v428
  %v530 = vpop.f32.mrf.mxu0
  %v531 = vadd.f32 0.0, %v530
  %v532 = vpop.f32.mrf.mxu0
  %533 = vdwg.mxu0
  %v534 = vadd.f32 %v516, %v521
  %v535 = vadd.f32 %v534, %v526
  %v536 = vadd.f32 %v535, %v531
  %v537 = vrot.slane %v536, 4
  %v538 = vadd.f32 %v536, %v537
  %v539 = vrot.slane %v538, 2
  %v540 = vadd.f32 %v538, %v539
  %v541 = vrot.slane %v540, 1
  %v542 = vadd.f32 %v540, %v541
  %v543 = vmul.f32 %v542, 0.001953125
  %v544 = vsub.f32 %v417, %v543
  %v545 = vsub.f32 %v420, %v543
  %v546 = vsub.f32 %v425, %v543
  %v547 = vsub.f32 %v428, %v543
  %v548 = vmul.f32 %v544, %v544
  %v549 = vmul.f32 %v545, %v545
  %v550 = vmul.f32 %v546, %v546
  %v551 = vmul.f32 %v547, %v547
  %552 = vmatprep.subr.mxu0 0.0
  %553 = vmatpush1.msra.mxu0 %v448
  %554 = vmatprep.subr.mxu0 0.0
  %555 = vmatpush1.msra.mxu0 %v447
  %556 = vmatprep.subr.mxu0 0.0
  %557 = vmatpush1.msra.mxu0 %v446
  %558 = vmatprep.subr.mxu0 0.0
  %559 = vmatpush1.msra.mxu0 %v445
  %560 = vmatprep.subr.mxu0 0.0
  %561 = vmatpush1.msra.mxu0 %v444
  %562 = vmatprep.subr.mxu0 0.0
  %563 = vmatpush1.msra.mxu0 %v443
  %564 = vmatprep.subr.mxu0 0.0
  %565 = vmatpush1.msra.mxu0 %v442
  %566 = vmatprep.subr.mxu0 0.0
  %567 = vmatpush1.msra.mxu0 %v441
  %568 = vmatprep.subr.mxu0 0.0
  %569 = vmatpush1.msra.mxu0 %v440
  %570 = vmatprep.subr.mxu0 0.0
  %571 = vmatpush1.msra.mxu0 %v439
  %572 = vmatprep.subr.mxu0 0.0
  %573 = vmatpush1.msra.mxu0 %v438
  %574 = vmatprep.subr.mxu0 0.0
  %575 = vmatpush1.msra.mxu0 %v437
  %576 = vmatprep.subr.mxu0 0.0
  %577 = vmatpush1.msra.mxu0 %v436
  %578 = vmatprep.subr.mxu0 0.0
  %579 = vmatpush1.msra.mxu0 %v435
  %580 = vmatprep.subr.mxu0 0.0
  %581 = vmatpush1.msra.mxu0 %v434
  %582 = vmatprep.subr.mxu0 0.0
  %583 = vmatpush1.msra.mxu0 %v433
  %584 = vmatprep.subr.mxu0 0.0
  %585 = vmatpush2.msra.mxu0 0.0
  %586 = vmatprep.subr.mxu0 0.0
  %587 = vmatpush2.msra.mxu0 0.0
  %588 = vmatprep.subr.mxu0 0.0
  %589 = vmatpush2.msra.mxu0 0.0
  %590 = vmatprep.subr.mxu0 0.0
  %591 = vmatpush2.msra.mxu0 0.0
  %592 = vmatprep.subr.mxu0 0.0
  %593 = vmatpush2.msra.mxu0 0.0
  %594 = vmatprep.subr.mxu0 0.0
  %595 = vmatpush2.msra.mxu0 0.0
  %596 = vmatprep.subr.mxu0 0.0
  %597 = vmatpush2.msra.mxu0 0.0
  %598 = vmatprep.subr.mxu0 0.0
  %599 = vmatpush2.msra.mxu0 0.0
  %600 = vmatprep.subr.mxu0 0.0
  %601 = vmatpush2.msra.mxu0 0.0
  %602 = vmatprep.subr.mxu0 0.0
  %603 = vmatpush2.msra.mxu0 0.0
  %604 = vmatprep.subr.mxu0 0.0
  %605 = vmatpush2.msra.mxu0 0.0
  %606 = vmatprep.subr.mxu0 0.0
  %607 = vmatpush2.msra.mxu0 0.0
  %608 = vmatprep.subr.mxu0 0.0
  %609 = vmatpush2.msra.mxu0 0.0
  %610 = vmatprep.subr.mxu0 0.0
  %611 = vmatpush2.msra.mxu0 0.0
  %612 = vmatprep.subr.mxu0 0.0
  %613 = vmatpush2.msra.mxu0 0.0
  %614 = vmatprep.subr.mxu0 0.0
  %615 = vmatpush2.msra.mxu0 0.0
  %616 = vmatprep.mubr.f32.mxu0 0.0
  %617 = vmatmul.mubr.f32.gmra.mxu0 %v548
  %v618 = vpop.f32.mrf.mxu0
  %v619 = vadd.f32 0.0, %v618
  %v620 = vpop.f32.mrf.mxu0
  %621 = vmatprep.mubr.f32.mxu0 0.0
  %622 = vmatmul.mubr.f32.gmra.mxu0 %v549
  %v623 = vpop.f32.mrf.mxu0
  %v624 = vadd.f32 0.0, %v623
  %v625 = vpop.f32.mrf.mxu0
  %626 = vmatprep.mubr.f32.mxu0 0.0
  %627 = vmatmul.mubr.f32.gmra.mxu0 %v550
  %v628 = vpop.f32.mrf.mxu0
  %v629 = vadd.f32 0.0, %v628
  %v630 = vpop.f32.mrf.mxu0
  %631 = vmatprep.mubr.f32.mxu0 0.0
  %632 = vmatmul.mubr.f32.gmra.mxu0 %v551
  %v633 = vpop.f32.mrf.mxu0
  %v634 = vadd.f32 0.0, %v633
  %v635 = vpop.f32.mrf.mxu0
  %636 = vdwg.mxu0
  %v637 = vadd.f32 %v619, %v624
  %v638 = vadd.f32 %v637, %v629
  %v639 = vadd.f32 %v638, %v634
  %v640 = vrot.slane %v639, 4
  %v641 = vadd.f32 %v639, %v640
  %v642 = vrot.slane %v641, 2
  %v643 = vadd.f32 %v641, %v642
  %v644 = vrot.slane %v643, 1
  %v645 = vadd.f32 %v643, %v644
  %v646 = vmul.f32 %v645, 0.001953125
  %v647 = vadd.f32 %v646, 1e-05
  %v648 = vrsqrt.pop %v647
  %v649 = vmul.f32 %v431, %v648
  %v650 = vmul.f32 %v543, %v649
  %v651 = vsub.f32 %v432, %v650
  %v653 = vlaneseq
  %v654 = vshrl.u32 %v653, 7
  %v655 = vsub.s32 0, %v654
  %v656 = vrot.slane %v649, %v655
  %v658 = vmul.f32 %v417, %v656
  %v659 = vmul.f32 %v420, %v656
  %v660 = vmul.f32 %v425, %v656
  %v661 = vmul.f32 %v428, %v656
  %v663 = vlaneseq
  %v664 = vshrl.u32 %v663, 7
  %v665 = vsub.s32 0, %v664
  %v666 = vrot.slane %v651, %v665
  %v668 = vadd.f32 %v658, %v666
  %v669 = vadd.f32 %v659, %v666
  %v670 = vadd.f32 %v660, %v666
  %v671 = vadd.f32 %v661, %v666
  %v672 = vmax.f32 %v668, 0.0
  %v673 = vmax.f32 %v669, 0.0
  %v674 = vmax.f32 %v670, 0.0
  %v675 = vmax.f32 %v671, 0.0
  %vm676 = vcmask 1040384
  %vm677 = vsmask.f32 256
  %vm678 = vmand %vm676, %vm677
  %v679 = vld [vmem:[#allocation2] sm:$0x1]
  %v680 = vsel %vm678, 0, %v679
  %681 = vst [vmem:[#allocation2] sm:$0x1] %v680
  %v682 = vld [vmem:[#allocation2 + $0xc] sm:$0x1]
  %v683 = vsel %vm678, 0, %v682
  %684 = vst [vmem:[#allocation2 + $0xc] sm:$0x1] %v683
  %vm685 = vsmask.f32 7938
  %vm686 = vmand %vm676, %vm685
  %v687 = vld [vmem:[#allocation2 + $0x8] sm:$0x1]
  %v688 = vsel %vm686, 0, %v687
  %689 = vst [vmem:[#allocation2 + $0x8] sm:$0x1] %v688
  %v690 = vld [vmem:[#allocation2 + $0x14] sm:$0x1]
  %v691 = vsel %vm686, 0, %v690
  %692 = vst [vmem:[#allocation2 + $0x14] sm:$0x1] %v691
  %v693 = vpack.c.bf16 %v673, %v672
  %v694 = vpack.c.bf16 %v675, %v674
  %v697 = vunpack.c.l.b16 %v693
  %v698 = vunpack.c.h.b16 %v693
  %v699 = vunpack.c.l.b16 %v694
  %v700 = vunpack.c.h.b16 %v694
  %v701 = vpack.c.b16 %v697, %v697
  %v702 = vpack.c.b16 %v698, %v698
  %v703 = vpack.c.b16 %v699, %v699
  %v704 = vpack.c.b16 %v700, %v700
  %vm705 = vsmask.f32 4368
  %vm706 = vmor %vm677, %vm705
  %v708 = vshrl.u32 %v701, 16
  %v710 = vrot.slane %v708, 7
  %v711 = vshll.u32 %v701, 16
  %v713 = vor.u32 %v710, %v711
  %v714 = vrot.slane %v710, 4
  %v716 = vshrl.u32 %v702, 16
  %v718 = vrot.slane %v716, 7
  %v719 = vshll.u32 %v702, 16
  %v721 = vor.u32 %v718, %v719
  %v722 = vsel %vm706, %v714, %v721
  %v723 = vrot.slane %v718, 4
  %v725 = vshrl.u32 %v703, 16
  %v727 = vrot.slane %v725, 7
  %v728 = vshll.u32 %v703, 16
  %v730 = vor.u32 %v727, %v728
  %v731 = vrot.slane %v727, 4
  %v733 = vshrl.u32 %v704, 16
  %v735 = vrot.slane %v733, 7
  %v736 = vshll.u32 %v704, 16
  %v738 = vor.u32 %v735, %v736
  %v739 = vsel %vm706, %v731, %v738
  %v740 = vrot.slane %v735, 4
  %vm747 = vcmask 1043456
  %vm748 = vmand %vm747, %vm685
  %v749 = vld [vmem:[#allocation2] sm:$0xf]
  %v750 = vsel %vm748, %v713, %v749
  %751 = vst [vmem:[#allocation2] sm:$0xf] %v750
  %752 = vst [vmem:[#allocation2 + $0x4] sm:$0xf] %v722
  %v753 = vld [vmem:[#allocation2 + $0x8] sm:$0x1]
  %v754 = vsel %vm678, %v723, %v753
  %755 = vst [vmem:[#allocation2 + $0x8] sm:$0x1] %v754
  %v756 = vld [vmem:[#allocation2 + $0xc] sm:$0xf]
  %v757 = vsel %vm748, %v730, %v756
  %758 = vst [vmem:[#allocation2 + $0xc] sm:$0xf] %v757
  %759 = vst [vmem:[#allocation2 + $0x10] sm:$0xf] %v739
  %v760 = vld [vmem:[#allocation2 + $0x14] sm:$0x1]
  %v761 = vsel %vm678, %v740, %v760
  %762 = vst [vmem:[#allocation2 + $0x14] sm:$0x1] %v761
  %v763 = vld [vmem:[#allocation2] sm:$0xf]
  %v764 = vld [vmem:[#allocation2 + $0x4] sm:$0xf]
  %v765 = vld [vmem:[#allocation2 + $0xc] sm:$0xf]
  %v766 = vld [vmem:[#allocation2 + $0x10] sm:$0xf]
  %v767 = vld [vmem:[#allocation2 + $0x8] sm:$0x1]
  %v768 = vld [vmem:[#allocation2 + $0x14] sm:$0x1]
  %v770 = vshrl.u32 %v763, 16
  %v772 = vrot.slane %v770, 4
  %v773 = vshll.u32 %v763, 16
  %v775 = vrot.slane %v773, 5
  %v776 = vor.u32 %v772, %v775
  %v777 = vrot.slane %v776, 4
  %v779 = vshll.u32 %v764, 16
  %v781 = vrot.slane %v779, 5
  %v782 = vsel %vm41, %v777, %v781
  %v783 = vshrl.u32 %v764, 16
  %v785 = vrot.slane %v783, 4
  %v786 = vor.u32 %v785, %v781
  %v787 = vrot.slane %v786, 4
  %v789 = vshll.u32 %v767, 16
  %v791 = vrot.slane %v789, 5
  %v792 = vsel %vm41, %v787, %v791
  %v794 = vshrl.u32 %v765, 16
  %v796 = vrot.slane %v794, 4
  %v797 = vshll.u32 %v765, 16
  %v799 = vrot.slane %v797, 5
  %v800 = vor.u32 %v796, %v799
  %v801 = vrot.slane %v800, 4
  %v803 = vshll.u32 %v766, 16
  %v805 = vrot.slane %v803, 5
  %v806 = vsel %vm41, %v801, %v805
  %v807 = vshrl.u32 %v766, 16
  %v809 = vrot.slane %v807, 4
  %v810 = vor.u32 %v809, %v805
  %v811 = vrot.slane %v810, 4
  %v813 = vshll.u32 %v768, 16
  %v815 = vrot.slane %v813, 5
  %v816 = vsel %vm41, %v811, %v815
  %v817 = vld [vmem:[#allocation2] sm:$0xe]
  %v818 = vld [vmem:[#allocation2 + $0xc] sm:$0xe]
  %v825 = vrot.slane %v817, 5
  %v826 = vrot.slane %v825, 4
  %v827 = vrot.slane %v764, 5
  %v828 = vsel %vm100, %v826, %v827
  %v829 = vrot.slane %v827, 4
  %v830 = vrot.slane %v767, 5
  %v831 = vsel %vm100, %v829, %v830
  %v832 = vrot.slane %v818, 5
  %v833 = vrot.slane %v832, 4
  %v834 = vrot.slane %v766, 5
  %v835 = vsel %vm100, %v833, %v834
  %v836 = vrot.slane %v834, 4
  %v837 = vrot.slane %v768, 5
  %v838 = vsel %vm100, %v836, %v837
  %v841 = vunpack.c.l.b16 %v763
  %v842 = vunpack.c.l.b16 %v764
  %v843 = vunpack.c.l.b16 %v765
  %v844 = vunpack.c.l.b16 %v766
  %v845 = vpack.c.b16 %v842, %v841
  %v846 = vpack.c.b16 %v844, %v843
  %v849 = vunpack.c.l.b16 %v782
  %v850 = vunpack.c.l.b16 %v792
  %v851 = vunpack.c.l.b16 %v806
  %v852 = vunpack.c.l.b16 %v816
  %v853 = vpack.c.b16 %v850, %v849
  %v854 = vpack.c.b16 %v852, %v851
  %v857 = vunpack.c.l.b16 %v828
  %v858 = vunpack.c.l.b16 %v831
  %v859 = vunpack.c.l.b16 %v835
  %v860 = vunpack.c.l.b16 %v838
  %v861 = vpack.c.b16 %v858, %v857
  %v862 = vpack.c.b16 %v860, %v859
  %v865 = vld [vmem:[%s3] sm:$0xf]
  %v866 = vld [vmem:[%s3 + $0x4] sm:$0xf]
  %v867 = vld [vmem:[%s3 + $0x8] sm:$0xf]
  %v868 = vld [vmem:[%s3 + $0xc] sm:$0xf]
  %v869 = vld [vmem:[%s3 + $0x10] sm:$0xf]
  %v870 = vld [vmem:[%s3 + $0x14] sm:$0xf]
  %v871 = vld [vmem:[%s3 + $0x18] sm:$0xf]
  %v872 = vld [vmem:[%s3 + $0x1c] sm:$0xf]
  %v873 = vld [vmem:[%s3 + $0x20] sm:$0xf]
  %v874 = vld [vmem:[%s3 + $0x24] sm:$0xf]
  %v875 = vld [vmem:[%s3 + $0x28] sm:$0xf]
  %v876 = vld [vmem:[%s3 + $0x2c] sm:$0xf]
  %v877 = vld [vmem:[%s3 + $0x30] sm:$0xf]
  %v878 = vld [vmem:[%s3 + $0x34] sm:$0xf]
  %v879 = vld [vmem:[%s3 + $0x38] sm:$0xf]
  %v880 = vld [vmem:[%s3 + $0x3c] sm:$0xf]
  %v881 = vld [vmem:[%s3 + $0x40] sm:$0xf]
  %v882 = vld [vmem:[%s3 + $0x44] sm:$0xf]
  %v883 = vld [vmem:[%s3 + $0x48] sm:$0xf]
  %v884 = vld [vmem:[%s3 + $0x4c] sm:$0xf]
  %v885 = vld [vmem:[%s3 + $0x50] sm:$0xf]
  %v886 = vld [vmem:[%s3 + $0x54] sm:$0xf]
  %v887 = vld [vmem:[%s3 + $0x58] sm:$0xf]
  %v888 = vld [vmem:[%s3 + $0x5c] sm:$0xf]
  %v889 = vld [vmem:[%s3 + $0x60] sm:$0xf]
  %v890 = vld [vmem:[%s3 + $0x64] sm:$0xf]
  %v891 = vld [vmem:[%s3 + $0x68] sm:$0xf]
  %v892 = vld [vmem:[%s3 + $0x6c] sm:$0xf]
  %v893 = vld [vmem:[%s3 + $0x70] sm:$0xf]
  %v894 = vld [vmem:[%s3 + $0x74] sm:$0xf]
  %v895 = vld [vmem:[%s3 + $0x78] sm:$0xf]
  %v896 = vld [vmem:[%s3 + $0x7c] sm:$0xf]
  %v897 = vld [vmem:[%s3 + $0x80] sm:$0xf]
  %v898 = vld [vmem:[%s3 + $0x84] sm:$0xf]
  %v899 = vld [vmem:[%s3 + $0x88] sm:$0xf]
  %v900 = vld [vmem:[%s3 + $0x8c] sm:$0xf]
  %v901 = vld [vmem:[%s3 + $0x90] sm:$0xf]
  %v902 = vld [vmem:[%s3 + $0x94] sm:$0xf]
  %v903 = vld [vmem:[%s3 + $0x98] sm:$0xf]
  %v904 = vld [vmem:[%s3 + $0x9c] sm:$0xf]
  %v905 = vld [vmem:[%s3 + $0xa0] sm:$0xf]
  %v906 = vld [vmem:[%s3 + $0xa4] sm:$0xf]
  %v907 = vld [vmem:[%s3 + $0xa8] sm:$0xf]
  %v908 = vld [vmem:[%s3 + $0xac] sm:$0xf]
  %v909 = vld [vmem:[%s3 + $0xb0] sm:$0xf]
  %v910 = vld [vmem:[%s3 + $0xb4] sm:$0xf]
  %v911 = vld [vmem:[%s3 + $0xb8] sm:$0xf]
  %v912 = vld [vmem:[%s3 + $0xbc] sm:$0xf]
  %v961 = vunpack.c.l.b16 %v865
  %v962 = vunpack.c.l.b16 %v866
  %v963 = vunpack.c.l.b16 %v867
  %v964 = vunpack.c.l.b16 %v868
  %v965 = vunpack.c.l.b16 %v869
  %v966 = vunpack.c.l.b16 %v870
  %v967 = vunpack.c.l.b16 %v871
  %v968 = vunpack.c.l.b16 %v872
  %v969 = vunpack.c.l.b16 %v873
  %v970 = vunpack.c.l.b16 %v874
  %v971 = vunpack.c.l.b16 %v875
  %v972 = vunpack.c.l.b16 %v876
  %v973 = vunpack.c.l.b16 %v877
  %v974 = vunpack.c.l.b16 %v878
  %v975 = vunpack.c.l.b16 %v879
  %v976 = vunpack.c.l.b16 %v880
  %v977 = vunpack.c.l.b16 %v881
  %v978 = vunpack.c.l.b16 %v882
  %v979 = vunpack.c.l.b16 %v883
  %v980 = vunpack.c.l.b16 %v884
  %v981 = vunpack.c.l.b16 %v885
  %v982 = vunpack.c.l.b16 %v886
  %v983 = vunpack.c.l.b16 %v887
  %v984 = vunpack.c.l.b16 %v888
  %v985 = vunpack.c.l.b16 %v889
  %v986 = vunpack.c.l.b16 %v890
  %v987 = vunpack.c.l.b16 %v891
  %v988 = vunpack.c.l.b16 %v892
  %v989 = vunpack.c.l.b16 %v893
  %v990 = vunpack.c.l.b16 %v894
  %v991 = vunpack.c.l.b16 %v895
  %v992 = vunpack.c.l.b16 %v896
  %v993 = vunpack.c.l.b16 %v897
  %v994 = vunpack.c.l.b16 %v898
  %v995 = vunpack.c.l.b16 %v899
  %v996 = vunpack.c.l.b16 %v900
  %v997 = vunpack.c.l.b16 %v901
  %v998 = vunpack.c.l.b16 %v902
  %v999 = vunpack.c.l.b16 %v903
  %v1000 = vunpack.c.l.b16 %v904
  %v1001 = vunpack.c.l.b16 %v905
  %v1002 = vunpack.c.l.b16 %v906
  %v1003 = vunpack.c.l.b16 %v907
  %v1004 = vunpack.c.l.b16 %v908
  %v1005 = vunpack.c.l.b16 %v909
  %v1006 = vunpack.c.l.b16 %v910
  %v1007 = vunpack.c.l.b16 %v911
  %v1008 = vunpack.c.l.b16 %v912
  %v1009 = vpack.c.b16 %v962, %v961
  %v1010 = vpack.c.b16 %v964, %v963
  %v1011 = vpack.c.b16 %v966, %v965
  %v1012 = vpack.c.b16 %v968, %v967
  %v1013 = vpack.c.b16 %v970, %v969
  %v1014 = vpack.c.b16 %v972, %v971
  %v1015 = vpack.c.b16 %v974, %v973
  %v1016 = vpack.c.b16 %v976, %v975
  %v1017 = vpack.c.b16 %v978, %v977
  %v1018 = vpack.c.b16 %v980, %v979
  %v1019 = vpack.c.b16 %v982, %v981
  %v1020 = vpack.c.b16 %v984, %v983
  %v1021 = vpack.c.b16 %v986, %v985
  %v1022 = vpack.c.b16 %v988, %v987
  %v1023 = vpack.c.b16 %v990, %v989
  %v1024 = vpack.c.b16 %v992, %v991
  %v1025 = vpack.c.b16 %v994, %v993
  %v1026 = vpack.c.b16 %v996, %v995
  %v1027 = vpack.c.b16 %v998, %v997
  %v1028 = vpack.c.b16 %v1000, %v999
  %v1029 = vpack.c.b16 %v1002, %v1001
  %v1030 = vpack.c.b16 %v1004, %v1003
  %v1031 = vpack.c.b16 %v1006, %v1005
  %v1032 = vpack.c.b16 %v1008, %v1007
  %1057 = vmatprep.subr.bf16.mxu0 0
  %1058 = vmatpush1.bf16.msra.mxu0 %v1016
  %1059 = vmatprep.subr.bf16.mxu0 0
  %1060 = vmatpush1.bf16.msra.mxu0 %v1015
  %1061 = vmatprep.subr.bf16.mxu0 0
  %1062 = vmatpush1.bf16.msra.mxu0 %v1014
  %1063 = vmatprep.subr.bf16.mxu0 0
  %1064 = vmatpush1.bf16.msra.mxu0 %v1013
  %1065 = vmatprep.subr.bf16.mxu0 0
  %1066 = vmatpush1.bf16.msra.mxu0 %v1012
  %1067 = vmatprep.subr.bf16.mxu0 0
  %1068 = vmatpush1.bf16.msra.mxu0 %v1011
  %1069 = vmatprep.subr.bf16.mxu0 0
  %1070 = vmatpush1.bf16.msra.mxu0 %v1010
  %1071 = vmatprep.subr.bf16.mxu0 0
  %1072 = vmatpush1.bf16.msra.mxu0 %v1009
  %1073 = vmatprep.subr.bf16.mxu0 0
  %1074 = vmatpush2.bf16.msra.mxu0 %v1024
  %1075 = vmatprep.subr.bf16.mxu0 0
  %1076 = vmatpush2.bf16.msra.mxu0 %v1023
  %1077 = vmatprep.subr.bf16.mxu0 0
  %1078 = vmatpush2.bf16.msra.mxu0 %v1022
  %1079 = vmatprep.subr.bf16.mxu0 0
  %1080 = vmatpush2.bf16.msra.mxu0 %v1021
  %1081 = vmatprep.subr.bf16.mxu0 0
  %1082 = vmatpush2.bf16.msra.mxu0 %v1020
  %1083 = vmatprep.subr.bf16.mxu0 0
  %1084 = vmatpush2.bf16.msra.mxu0 %v1019
  %1085 = vmatprep.subr.bf16.mxu0 0
  %1086 = vmatpush2.bf16.msra.mxu0 %v1018
  %1087 = vmatprep.subr.bf16.mxu0 0
  %1088 = vmatpush2.bf16.msra.mxu0 %v1017
  %1089 = vmatprep.mubr.bf16.mxu0 %v853
  %1090 = vmatmul.mubr.bf16.gmra.mxu0 %v845
  %v1091 = vpop.f32.mrf.mxu0
  %v1092 = vadd.f32 0.0, %v1091
  %v1093 = vpop.f32.mrf.mxu0
  %v1094 = vpop.f32.mrf.mxu0
  %v1095 = vadd.f32 0.0, %v1094
  %v1096 = vpop.f32.mrf.mxu0
  %1097 = vmatprep.mubr.bf16.mxu0 %v854
  %1098 = vmatmul.mubr.bf16.gmra.mxu0 %v846
  %v1099 = vpop.f32.mrf.mxu0
  %v1100 = vadd.f32 0.0, %v1099
  %v1101 = vpop.f32.mrf.mxu0
  %v1102 = vpop.f32.mrf.mxu0
  %v1103 = vadd.f32 0.0, %v1102
  %v1104 = vpop.f32.mrf.mxu0
  %1105 = vdwg.mxu0
  %1106 = vmatprep.subr.bf16.mxu0 0
  %1107 = vmatpush1.bf16.msra.mxu0 %v1032
  %1108 = vmatprep.subr.bf16.mxu0 0
  %1109 = vmatpush1.bf16.msra.mxu0 %v1031
  %1110 = vmatprep.subr.bf16.mxu0 0
  %1111 = vmatpush1.bf16.msra.mxu0 %v1030
  %1112 = vmatprep.subr.bf16.mxu0 0
  %1113 = vmatpush1.bf16.msra.mxu0 %v1029
  %1114 = vmatprep.subr.bf16.mxu0 0
  %1115 = vmatpush1.bf16.msra.mxu0 %v1028
  %1116 = vmatprep.subr.bf16.mxu0 0
  %1117 = vmatpush1.bf16.msra.mxu0 %v1027
  %1118 = vmatprep.subr.bf16.mxu0 0
  %1119 = vmatpush1.bf16.msra.mxu0 %v1026
  %1120 = vmatprep.subr.bf16.mxu0 0
  %1121 = vmatpush1.bf16.msra.mxu0 %v1025
  %1122 = vmatprep.subr.bf16.mxu0 0
  %1123 = vmatpush2.bf16.msra.mxu0 0
  %1124 = vmatprep.subr.bf16.mxu0 0
  %1125 = vmatpush2.bf16.msra.mxu0 0
  %1126 = vmatprep.subr.bf16.mxu0 0
  %1127 = vmatpush2.bf16.msra.mxu0 0
  %1128 = vmatprep.subr.bf16.mxu0 0
  %1129 = vmatpush2.bf16.msra.mxu0 0
  %1130 = vmatprep.subr.bf16.mxu0 0
  %1131 = vmatpush2.bf16.msra.mxu0 0
  %1132 = vmatprep.subr.bf16.mxu0 0
  %1133 = vmatpush2.bf16.msra.mxu0 0
  %1134 = vmatprep.subr.bf16.mxu0 0
  %1135 = vmatpush2.bf16.msra.mxu0 0
  %1136 = vmatprep.subr.bf16.mxu0 0
  %1137 = vmatpush2.bf16.msra.mxu0 0
  %1138 = vmatprep.mubr.bf16.mxu0 0
  %1139 = vmatmul.mubr.bf16.gmra.mxu0 %v861
  %v1140 = vpop.f32.mrf.mxu0
  %v1141 = vadd.f32 %v1092, %v1140
  %v1142 = vpop.f32.mrf.mxu0
  %v1143 = vpop.f32.mrf.mxu0
  %v1144 = vadd.f32 %v1095, %v1143
  %v1145 = vpop.f32.mrf.mxu0
  %1146 = vmatprep.mubr.bf16.mxu0 0
  %1147 = vmatmul.mubr.bf16.gmra.mxu0 %v862
  %v1148 = vpop.f32.mrf.mxu0
  %v1149 = vadd.f32 %v1100, %v1148
  %v1150 = vpop.f32.mrf.mxu0
  %v1151 = vpop.f32.mrf.mxu0
  %v1152 = vadd.f32 %v1103, %v1151
  %v1153 = vpop.f32.mrf.mxu0
  %1154 = vdwg.mxu0
  %v1155 = vld [vmem:[%s6] sm:$0x1]
  %v1156 = vld [vmem:[%s7] sm:$0x1]
  %v1157 = vld [vmem:[%s8] sm:$0xff]
  %v1158 = vld [vmem:[%s8 + $0x8] sm:$0xff]
  %v1159 = vld [vmem:[%s8 + $0x10] sm:$0xff]
  %v1160 = vld [vmem:[%s8 + $0x18] sm:$0xff]
  %v1161 = vld [vmem:[%s8 + $0x20] sm:$0xff]
  %v1162 = vld [vmem:[%s8 + $0x28] sm:$0xff]
  %v1163 = vld [vmem:[%s8 + $0x30] sm:$0xff]
  %v1164 = vld [vmem:[%s8 + $0x38] sm:$0xff]
  %v1165 = vld [vmem:[%s8 + $0x40] sm:$0xff]
  %v1166 = vld [vmem:[%s8 + $0x48] sm:$0xff]
  %v1167 = vld [vmem:[%s8 + $0x50] sm:$0xff]
  %v1168 = vld [vmem:[%s8 + $0x58] sm:$0xff]
  %v1169 = vld [vmem:[%s8 + $0x60] sm:$0xff]
  %v1170 = vld [vmem:[%s8 + $0x68] sm:$0xff]
  %v1171 = vld [vmem:[%s8 + $0x70] sm:$0xff]
  %v1172 = vld [vmem:[%s8 + $0x78] sm:$0xff]
  %1173 = vmatprep.subr.mxu0 0.0
  %1174 = vmatpush1.msra.mxu0 %v1172
  %1175 = vmatprep.subr.mxu0 0.0
  %1176 = vmatpush1.msra.mxu0 %v1171
  %1177 = vmatprep.subr.mxu0 0.0
  %1178 = vmatpush1.msra.mxu0 %v1170
  %1179 = vmatprep.subr.mxu0 0.0
  %1180 = vmatpush1.msra.mxu0 %v1169
  %1181 = vmatprep.subr.mxu0 0.0
  %1182 = vmatpush1.msra.mxu0 %v1168
  %1183 = vmatprep.subr.mxu0 0.0
  %1184 = vmatpush1.msra.mxu0 %v1167
  %1185 = vmatprep.subr.mxu0 0.0
  %1186 = vmatpush1.msra.mxu0 %v1166
  %1187 = vmatprep.subr.mxu0 0.0
  %1188 = vmatpush1.msra.mxu0 %v1165
  %1189 = vmatprep.subr.mxu0 0.0
  %1190 = vmatpush1.msra.mxu0 %v1164
  %1191 = vmatprep.subr.mxu0 0.0
  %1192 = vmatpush1.msra.mxu0 %v1163
  %1193 = vmatprep.subr.mxu0 0.0
  %1194 = vmatpush1.msra.mxu0 %v1162
  %1195 = vmatprep.subr.mxu0 0.0
  %1196 = vmatpush1.msra.mxu0 %v1161
  %1197 = vmatprep.subr.mxu0 0.0
  %1198 = vmatpush1.msra.mxu0 %v1160
  %1199 = vmatprep.subr.mxu0 0.0
  %1200 = vmatpush1.msra.mxu0 %v1159
  %1201 = vmatprep.subr.mxu0 0.0
  %1202 = vmatpush1.msra.mxu0 %v1158
  %1203 = vmatprep.subr.mxu0 0.0
  %1204 = vmatpush1.msra.mxu0 %v1157
  %1205 = vmatprep.subr.mxu0 0.0
  %1206 = vmatpush2.msra.mxu0 0.0
  %1207 = vmatprep.subr.mxu0 0.0
  %1208 = vmatpush2.msra.mxu0 0.0
  %1209 = vmatprep.subr.mxu0 0.0
  %1210 = vmatpush2.msra.mxu0 0.0
  %1211 = vmatprep.subr.mxu0 0.0
  %1212 = vmatpush2.msra.mxu0 0.0
  %1213 = vmatprep.subr.mxu0 0.0
  %1214 = vmatpush2.msra.mxu0 0.0
  %1215 = vmatprep.subr.mxu0 0.0
  %1216 = vmatpush2.msra.mxu0 0.0
  %1217 = vmatprep.subr.mxu0 0.0
  %1218 = vmatpush2.msra.mxu0 0.0
  %1219 = vmatprep.subr.mxu0 0.0
  %1220 = vmatpush2.msra.mxu0 0.0
  %1221 = vmatprep.subr.mxu0 0.0
  %1222 = vmatpush2.msra.mxu0 0.0
  %1223 = vmatprep.subr.mxu0 0.0
  %1224 = vmatpush2.msra.mxu0 0.0
  %1225 = vmatprep.subr.mxu0 0.0
  %1226 = vmatpush2.msra.mxu0 0.0
  %1227 = vmatprep.subr.mxu0 0.0
  %1228 = vmatpush2.msra.mxu0 0.0
  %1229 = vmatprep.subr.mxu0 0.0
  %1230 = vmatpush2.msra.mxu0 0.0
  %1231 = vmatprep.subr.mxu0 0.0
  %1232 = vmatpush2.msra.mxu0 0.0
  %1233 = vmatprep.subr.mxu0 0.0
  %1234 = vmatpush2.msra.mxu0 0.0
  %1235 = vmatprep.subr.mxu0 0.0
  %1236 = vmatpush2.msra.mxu0 0.0
  %1237 = vmatprep.mubr.f32.mxu0 0.0
  %1238 = vmatmul.mubr.f32.gmra.mxu0 %v1141
  %v1239 = vpop.f32.mrf.mxu0
  %v1240 = vadd.f32 0.0, %v1239
  %v1241 = vpop.f32.mrf.mxu0
  %1242 = vmatprep.mubr.f32.mxu0 0.0
  %1243 = vmatmul.mubr.f32.gmra.mxu0 %v1144
  %v1244 = vpop.f32.mrf.mxu0
  %v1245 = vadd.f32 0.0, %v1244
  %v1246 = vpop.f32.mrf.mxu0
  %1247 = vmatprep.mubr.f32.mxu0 0.0
  %1248 = vmatmul.mubr.f32.gmra.mxu0 %v1149
  %v1249 = vpop.f32.mrf.mxu0
  %v1250 = vadd.f32 0.0, %v1249
  %v1251 = vpop.f32.mrf.mxu0
  %1252 = vmatprep.mubr.f32.mxu0 0.0
  %1253 = vmatmul.mubr.f32.gmra.mxu0 %v1152
  %v1254 = vpop.f32.mrf.mxu0
  %v1255 = vadd.f32 0.0, %v1254
  %v1256 = vpop.f32.mrf.mxu0
  %1257 = vdwg.mxu0
  %v1258 = vadd.f32 %v1240, %v1245
  %v1259 = vadd.f32 %v1258, %v1250
  %v1260 = vadd.f32 %v1259, %v1255
  %v1261 = vrot.slane %v1260, 4
  %v1262 = vadd.f32 %v1260, %v1261
  %v1263 = vrot.slane %v1262, 2
  %v1264 = vadd.f32 %v1262, %v1263
  %v1265 = vrot.slane %v1264, 1
  %v1266 = vadd.f32 %v1264, %v1265
  %v1267 = vmul.f32 %v1266, 0.001953125
  %v1268 = vsub.f32 %v1141, %v1267
  %v1269 = vsub.f32 %v1144, %v1267
  %v1270 = vsub.f32 %v1149, %v1267
  %v1271 = vsub.f32 %v1152, %v1267
  %v1272 = vmul.f32 %v1268, %v1268
  %v1273 = vmul.f32 %v1269, %v1269
  %v1274 = vmul.f32 %v1270, %v1270
  %v1275 = vmul.f32 %v1271, %v1271
  %1276 = vmatprep.subr.mxu0 0.0
  %1277 = vmatpush1.msra.mxu0 %v1172
  %1278 = vmatprep.subr.mxu0 0.0
  %1279 = vmatpush1.msra.mxu0 %v1171
  %1280 = vmatprep.subr.mxu0 0.0
  %1281 = vmatpush1.msra.mxu0 %v1170
  %1282 = vmatprep.subr.mxu0 0.0
  %1283 = vmatpush1.msra.mxu0 %v1169
  %1284 = vmatprep.subr.mxu0 0.0
  %1285 = vmatpush1.msra.mxu0 %v1168
  %1286 = vmatprep.subr.mxu0 0.0
  %1287 = vmatpush1.msra.mxu0 %v1167
  %1288 = vmatprep.subr.mxu0 0.0
  %1289 = vmatpush1.msra.mxu0 %v1166
  %1290 = vmatprep.subr.mxu0 0.0
  %1291 = vmatpush1.msra.mxu0 %v1165
  %1292 = vmatprep.subr.mxu0 0.0
  %1293 = vmatpush1.msra.mxu0 %v1164
  %1294 = vmatprep.subr.mxu0 0.0
  %1295 = vmatpush1.msra.mxu0 %v1163
  %1296 = vmatprep.subr.mxu0 0.0
  %1297 = vmatpush1.msra.mxu0 %v1162
  %1298 = vmatprep.subr.mxu0 0.0
  %1299 = vmatpush1.msra.mxu0 %v1161
  %1300 = vmatprep.subr.mxu0 0.0
  %1301 = vmatpush1.msra.mxu0 %v1160
  %1302 = vmatprep.subr.mxu0 0.0
  %1303 = vmatpush1.msra.mxu0 %v1159
  %1304 = vmatprep.subr.mxu0 0.0
  %1305 = vmatpush1.msra.mxu0 %v1158
  %1306 = vmatprep.subr.mxu0 0.0
  %1307 = vmatpush1.msra.mxu0 %v1157
  %1308 = vmatprep.subr.mxu0 0.0
  %1309 = vmatpush2.msra.mxu0 0.0
  %1310 = vmatprep.subr.mxu0 0.0
  %1311 = vmatpush2.msra.mxu0 0.0
  %1312 = vmatprep.subr.mxu0 0.0
  %1313 = vmatpush2.msra.mxu0 0.0
  %1314 = vmatprep.subr.mxu0 0.0
  %1315 = vmatpush2.msra.mxu0 0.0
  %1316 = vmatprep.subr.mxu0 0.0
  %1317 = vmatpush2.msra.mxu0 0.0
  %1318 = vmatprep.subr.mxu0 0.0
  %1319 = vmatpush2.msra.mxu0 0.0
  %1320 = vmatprep.subr.mxu0 0.0
  %1321 = vmatpush2.msra.mxu0 0.0
  %1322 = vmatprep.subr.mxu0 0.0
  %1323 = vmatpush2.msra.mxu0 0.0
  %1324 = vmatprep.subr.mxu0 0.0
  %1325 = vmatpush2.msra.mxu0 0.0
  %1326 = vmatprep.subr.mxu0 0.0
  %1327 = vmatpush2.msra.mxu0 0.0
  %1328 = vmatprep.subr.mxu0 0.0
  %1329 = vmatpush2.msra.mxu0 0.0
  %1330 = vmatprep.subr.mxu0 0.0
  %1331 = vmatpush2.msra.mxu0 0.0
  %1332 = vmatprep.subr.mxu0 0.0
  %1333 = vmatpush2.msra.mxu0 0.0
  %1334 = vmatprep.subr.mxu0 0.0
  %1335 = vmatpush2.msra.mxu0 0.0
  %1336 = vmatprep.subr.mxu0 0.0
  %1337 = vmatpush2.msra.mxu0 0.0
  %1338 = vmatprep.subr.mxu0 0.0
  %1339 = vmatpush2.msra.mxu0 0.0
  %1340 = vmatprep.mubr.f32.mxu0 0.0
  %1341 = vmatmul.mubr.f32.gmra.mxu0 %v1272
  %v1342 = vpop.f32.mrf.mxu0
  %v1343 = vadd.f32 0.0, %v1342
  %v1344 = vpop.f32.mrf.mxu0
  %1345 = vmatprep.mubr.f32.mxu0 0.0
  %1346 = vmatmul.mubr.f32.gmra.mxu0 %v1273
  %v1347 = vpop.f32.mrf.mxu0
  %v1348 = vadd.f32 0.0, %v1347
  %v1349 = vpop.f32.mrf.mxu0
  %1350 = vmatprep.mubr.f32.mxu0 0.0
  %1351 = vmatmul.mubr.f32.gmra.mxu0 %v1274
  %v1352 = vpop.f32.mrf.mxu0
  %v1353 = vadd.f32 0.0, %v1352
  %v1354 = vpop.f32.mrf.mxu0
  %1355 = vmatprep.mubr.f32.mxu0 0.0
  %1356 = vmatmul.mubr.f32.gmra.mxu0 %v1275
  %v1357 = vpop.f32.mrf.mxu0
  %v1358 = vadd.f32 0.0, %v1357
  %v1359 = vpop.f32.mrf.mxu0
  %1360 = vdwg.mxu0
  %v1361 = vadd.f32 %v1343, %v1348
  %v1362 = vadd.f32 %v1361, %v1353
  %v1363 = vadd.f32 %v1362, %v1358
  %v1364 = vrot.slane %v1363, 4
  %v1365 = vadd.f32 %v1363, %v1364
  %v1366 = vrot.slane %v1365, 2
  %v1367 = vadd.f32 %v1365, %v1366
  %v1368 = vrot.slane %v1367, 1
  %v1369 = vadd.f32 %v1367, %v1368
  %v1370 = vmul.f32 %v1369, 0.001953125
  %v1371 = vadd.f32 %v1370, 1e-05
  %v1372 = vrsqrt.pop %v1371
  %v1373 = vmul.f32 %v1155, %v1372
  %v1374 = vmul.f32 %v1267, %v1373
  %v1375 = vsub.f32 %v1156, %v1374
  %v1377 = vlaneseq
  %v1378 = vshrl.u32 %v1377, 7
  %v1379 = vsub.s32 0, %v1378
  %v1380 = vrot.slane %v1373, %v1379
  %v1382 = vmul.f32 %v1141, %v1380
  %v1383 = vmul.f32 %v1144, %v1380
  %v1384 = vmul.f32 %v1149, %v1380
  %v1385 = vmul.f32 %v1152, %v1380
  %v1387 = vlaneseq
  %v1388 = vshrl.u32 %v1387, 7
  %v1389 = vsub.s32 0, %v1388
  %v1390 = vrot.slane %v1375, %v1389
  %v1392 = vadd.f32 %v1382, %v1390
  %v1393 = vadd.f32 %v1383, %v1390
  %v1394 = vadd.f32 %v1384, %v1390
  %v1395 = vadd.f32 %v1385, %v1390
  %v1396 = vld [vmem:[%s1] sm:$0xff]
  %v1397 = vld [vmem:[%s1 + $0x8] sm:$0xff]
  %v1398 = vld [vmem:[%s1 + $0x10] sm:$0xff]
  %v1399 = vld [vmem:[%s1 + $0x18] sm:$0xff]
  %v1400 = vadd.f32 %v1392, %v1396
  %v1401 = vadd.f32 %v1393, %v1397
  %v1402 = vadd.f32 %v1394, %v1398
  %v1403 = vadd.f32 %v1395, %v1399
  %v1404 = vmax.f32 %v1400, 0.0
  %v1405 = vmax.f32 %v1401, 0.0
  %v1406 = vmax.f32 %v1402, 0.0
  %v1407 = vmax.f32 %v1403, 0.0
  %1408 = vst [vmem:[%s9] sm:$0xff] %v1404
  %1409 = vst [vmem:[%s9 + $0x8] sm:$0xff] %v1405
  %1410 = vst [vmem:[%s9 + $0x10] sm:$0xff] %v1406
  %1411 = vst [vmem:[%s9 + $0x18] sm:$0xff] %v1407
  // Predicated region
  $region38: #{basic_block_forward.1} parent=0 // pred_check
    _
  $region39: #{basic_block_forward.1} parent=0 // pred_check_branch
    %1413 = sbr.rel (0) target = $region41
  $region40: #{basic_block_forward.1} parent=0 // pred_region
    _
  $region41: #{basic_block_forward.1} parent=0 // pred_fallthru
    _
  // Predicated region
  $region42: #{basic_block_forward.1} parent=0 // pred_check
    _
  $region43: #{basic_block_forward.1} parent=0 // pred_check_branch
    %1415 = sbr.rel (0) target = $region45
  $region44: #{basic_block_forward.1} parent=0 // pred_region
    _
  $region45: #{basic_block_forward.1} parent=0 // pred_fallthru
    _

</llo_original>
